<compile_context>
chip_gen: v7x
topology: tpu7x:2x2x1
jax: 0.10.0
libtpu: 0.0.40
codegen_flags: <defaults>
</compile_context>

<pallas_src>
import functools

import jax
import jax.numpy as jnp
from jax.experimental import pallas as pl
from jax.experimental.pallas import tpu as pltpu

_MIB = 1024 * 1024


def _tcl_kernel(pred_ref, gt_ref, mask_ref, out_ref, *,
                use_mse: bool, batch: int, tile_b: int, use_roll: bool):
    i = pl.program_id(0)

    p = pred_ref[...].astype(jnp.float32)            # (TB, S)
    g = gt_ref[...].astype(jnp.float32)              # (TB, S)
    inval = mask_ref[...] != 0                        # bool, True == excluded

    tb, s = p.shape
    needs_row_mask = (batch % tile_b) != 0            # last tile partially OOB?

    if use_roll:
        # Lane-aligned formulation: x_next[:, j] = x[:, j+1]; the wraparound
        # column (j == s-1) is masked out below.
        p_next = pltpu.roll(p, shift=s - 1, axis=1)
        g_next = pltpu.roll(g, shift=s - 1, axis=1)
        inval_next = pltpu.roll(inval.astype(jnp.int32), shift=s - 1, axis=1)

        dp = p_next - p
        dg = g_next - g

        lane = jax.lax.broadcasted_iota(jnp.int32, (tb, s), 1)
        valid = jnp.logical_and(jnp.logical_not(inval), inval_next == 0)
        valid = jnp.logical_and(valid, lane < (s - 1))
        if needs_row_mask:
            row = jax.lax.broadcasted_iota(jnp.int32, (tb, s), 0)
            valid = jnp.logical_and(valid, row < (batch - i * tile_b))
    else:
        # Slice formulation (tiny / non-lane-aligned S).
        dp = p[:, 1:] - p[:, :-1]
        dg = g[:, 1:] - g[:, :-1]
        valid = jnp.logical_and(jnp.logical_not(inval[:, 1:]),
                                jnp.logical_not(inval[:, :-1]))
        if needs_row_mask:
            row = jax.lax.broadcasted_iota(jnp.int32, (tb, s - 1), 0)
            valid = jnp.logical_and(valid, row < (batch - i * tile_b))

    err = dp - dg
    err = err * err if use_mse else jnp.abs(err)
    # select (not multiply) so garbage in padded out-of-bounds rows cannot
    # poison the sum with NaN/Inf.
    err = jnp.where(valid, err, 0.0)

    total = jnp.sum(err)
    cnt = jnp.sum(valid.astype(jnp.float32))

    # Per-tile partials; reduced in plain JAX outside the kernel.
    out_ref[0, 0, :, :] = jnp.broadcast_to(total, (8, 128))
    out_ref[0, 1, :, :] = jnp.broadcast_to(cnt, (8, 128))


def _vmem_capacity_bytes() -> int:
    try:
        info = pltpu.get_tpu_info()
        for name in ("vmem_capacity_bytes", "vmem_bytes", "vmem_size_bytes"):
            val = getattr(info, name, None)
            if val:
                return int(val)
    except Exception:
        pass
    return 128 * _MIB  # v5e/v6e default


def _choose_tiling(batch: int, seq: int, io_bytes_per_row: int):
    """Pick (tile_b, vmem_limit_bytes) per TPU generation."""
    vmem_cap = _vmem_capacity_bytes()
    if vmem_cap >= 96 * _MIB:          # v5e / v6e: 128 MiB VMEM per core
        target_tile_bytes = 6 * _MIB
        vmem_limit = 100 * _MIB
    else:                              # v7x: 64 MiB VMEM per TensorCore
        target_tile_bytes = 3 * _MIB
        vmem_limit = 52 * _MIB

    # Rows per tile sized against the f32 footprint of one pred/gt tile
    # (inputs are upcast to f32 in-kernel, so size by 4 B/elem regardless).
    rows = max(8, target_tile_bytes // max(1, seq * 4))
    rows = max(8, (rows // 8) * 8)     # sublane-aligned block rows

    # Clamp so 2x-buffered I/O + ~4 tile-sized f32 intermediates fit the
    # scoped budget (floor of 8 rows -- see TODO for an S-tiled variant).
    live_per_row = 2 * io_bytes_per_row + 4 * seq * 4
    max_rows = int((vmem_limit * 0.8) // max(1, live_per_row))
    max_rows = max(8, (max_rows // 8) * 8)
    rows = min(rows, max_rows)

    if rows >= batch:
        return batch, vmem_limit
    return rows, vmem_limit


def temporal_consistency_loss(predictions, ground_truth, mask,
                              weight=1.0, use_mse: bool = False, *,
                              tile_b=None):
    """Pallas TPU implementation of TemporalConsistencyLoss.forward.

    predictions, ground_truth: (B, S) float arrays (upcast to f32 in-kernel).
    mask: (B, S) bool (or integer) array, True/nonzero == excluded (invalid).
    Returns a scalar float32 loss.
    """
    assert predictions.shape == ground_truth.shape, "Shape mismatch preds vs gt"
    assert mask.shape == predictions.shape, "Shape mismatch mask vs preds"
    B, S = predictions.shape
    assert S >= 2, "Need at least two timesteps for a temporal difference"

    # 1 byte/elem of mask HBM traffic; the convert is fused into the Pallas
    # input read via allow_input_fusion (no standalone HBM->HBM pass under jit).
    mask_i8 = mask if mask.dtype == jnp.int8 else mask.astype(jnp.int8)

    p_isz = jnp.dtype(predictions.dtype).itemsize
    g_isz = jnp.dtype(ground_truth.dtype).itemsize
    io_bytes_per_row = S * (p_isz + g_isz + 1)

    TB, vmem_limit = _choose_tiling(B, S, io_bytes_per_row)
    if tile_b is not None:                       # test / tuning override
        TB = B if tile_b >= B else max(8, (int(tile_b) // 8) * 8)
    num_tiles = pl.cdiv(B, TB)

    use_roll = (S % 128 == 0)                    # lane-aligned -> XLU roll path

    kernel = functools.partial(
        _tcl_kernel, use_mse=bool(use_mse), batch=B, tile_b=TB,
        use_roll=use_roll)

    cost = pl.CostEstimate(
        flops=int(7 * B * S),
        transcendentals=0,
        bytes_accessed=int(B * S * (p_isz + g_isz + 1) + num_tiles * 2 * 8 * 128 * 4),
    )

    partials = pl.pallas_call(
        kernel,
        out_shape=jax.ShapeDtypeStruct((num_tiles, 2, 8, 128), jnp.float32),
        grid_spec=pltpu.PrefetchScalarGridSpec(
            num_scalar_prefetch=0,
            grid=(num_tiles,),
            in_specs=[
                pl.BlockSpec((TB, S), lambda i: (i, 0)),   # predictions
                pl.BlockSpec((TB, S), lambda i: (i, 0)),   # ground_truth
                pl.BlockSpec((TB, S), lambda i: (i, 0)),   # mask (int8)
            ],
            out_specs=pl.BlockSpec((1, 2, 8, 128), lambda i: (i, 0, 0, 0)),
        ),
        compiler_params=pltpu.CompilerParams(
            dimension_semantics=("parallel",),             # v7x: shard over TCs
            vmem_limit_bytes=int(vmem_limit),
            allow_input_fusion=[False, False, True],       # fuse mask convert
        ),
        cost_estimate=cost,
    )(predictions, ground_truth, mask_i8)

    total = jnp.sum(partials[:, 0, 0, 0])
    count = jnp.sum(partials[:, 1, 0, 0])
    return (total / count) * jnp.asarray(weight, dtype=jnp.float32)


def _reference(predictions, ground_truth, mask, weight=1.0, use_mse=False):
    # Pure-JAX reference mirroring the PyTorch module.
    p = predictions.astype(jnp.float32)
    g = ground_truth.astype(jnp.float32)
    dp = p[:, 1:] - p[:, :-1]
    dg = g[:, 1:] - g[:, :-1]
    valid = jnp.logical_not(jnp.logical_or(mask[:, 1:] != 0, mask[:, :-1] != 0))
    vf = valid.astype(jnp.float32)
    err = dp - dg
    err = err * err if use_mse else jnp.abs(err)
    return (jnp.sum(err * vf) / jnp.sum(vf)) * jnp.float32(weight)


if __name__ == "__main__":
    key = jax.random.PRNGKey(0)
    k1, k2, k3, k4, k5, k6 = jax.random.split(key, 6)

    loss_fn = jax.jit(temporal_consistency_loss,
                      static_argnames=("use_mse", "tile_b"))

    # Case 1: tiny shape (slice path, single tile) -- L1 and MSE variants.
    B, S = 2, 8
    preds = jax.random.normal(k1, (B, S), dtype=jnp.float32)
    gt = jax.random.normal(k2, (B, S), dtype=jnp.float32)
    mask = jax.random.bernoulli(k3, p=0.25, shape=(B, S))   # True == excluded

    out_l1 = loss_fn(preds, gt, mask, 1.0, use_mse=False)
    jax.block_until_ready(out_l1)
    ref_l1 = _reference(preds, gt, mask, 1.0, False)
    assert jnp.allclose(out_l1, ref_l1, atol=1e-5, rtol=1e-5), (out_l1, ref_l1)

    out_mse = loss_fn(preds, gt, mask, 2.5, use_mse=True)
    jax.block_until_ready(out_mse)
    ref_mse = _reference(preds, gt, mask, 2.5, True)
    assert jnp.allclose(out_mse, ref_mse, atol=1e-5, rtol=1e-5), (out_mse, ref_mse)

    # Case 2: roll path (S % 128 == 0), multi-tile grid, partial last tile
    # (B % tile_b != 0) and the per-tile partial-output reduction.
    B2, S2 = 20, 256
    preds2 = jax.random.normal(k4, (B2, S2), dtype=jnp.float32)
    gt2 = jax.random.normal(k5, (B2, S2), dtype=jnp.float32)
    mask2 = jax.random.bernoulli(k6, p=0.25, shape=(B2, S2))

    out2 = loss_fn(preds2, gt2, mask2, 1.0, use_mse=False, tile_b=8)
    jax.block_until_ready(out2)
    ref2 = _reference(preds2, gt2, mask2, 1.0, False)
    assert jnp.allclose(out2, ref2, atol=1e-5, rtol=1e-5), (out2, ref2)

    print("KERNEL_OK")
</pallas_src>

<mosaic_0001>
module attributes {stable_mosaic.version = 11 : i64} {
  func.func @_tcl_kernel(%arg0: i32, %arg1: memref<2x8xf32, #tpu.memory_space<vmem>>, %arg2: memref<2x8xf32, #tpu.memory_space<vmem>>, %arg3: memref<2x8xi8, #tpu.memory_space<vmem>>, %arg4: memref<1x2x8x128xf32, #tpu.memory_space<vmem>>) attributes {dimension_semantics = [#tpu.dimension_semantics<parallel>], iteration_bounds = array<i64: 1>, scalar_prefetch = 0 : i64, scratch_operands = 0 : i64, tpu.core_type = #tpu.core_type<tc>, window_params = [{transform_indices = @transform_0, window_bounds = array<i64: 2, 8>}, {transform_indices = @transform_1, window_bounds = array<i64: 2, 8>}, {transform_indices = @transform_2, window_bounds = array<i64: 2, 8>}, {transform_indices = @transform_3, window_bounds = array<i64: 1, 2, 8, 128>}]} {
    %c0 = arith.constant 0 : index
    %c0_0 = arith.constant 0 : index
    %0 = vector.load %arg1[%c0, %c0_0] : memref<2x8xf32, #tpu.memory_space<vmem>>, vector<2x8xf32>
    %c0_1 = arith.constant 0 : index
    %c0_2 = arith.constant 0 : index
    %1 = vector.load %arg2[%c0_1, %c0_2] : memref<2x8xf32, #tpu.memory_space<vmem>>, vector<2x8xf32>
    %c0_3 = arith.constant 0 : index
    %c0_4 = arith.constant 0 : index
    %2 = vector.load %arg3[%c0_3, %c0_4] : memref<2x8xi8, #tpu.memory_space<vmem>>, vector<2x8xi8>
    %c0_i8 = arith.constant 0 : i8
    %3 = vector.broadcast %c0_i8 : i8 to vector<2x8xi8>
    %4 = arith.cmpi ne, %2, %3 : vector<2x8xi8>
    %5 = vector.extract_strided_slice %0 {offsets = [0, 1], sizes = [2, 7], strides = [1, 1]} : vector<2x8xf32> to vector<2x7xf32>
    %6 = vector.extract_strided_slice %0 {offsets = [0, 0], sizes = [2, 7], strides = [1, 1]} : vector<2x8xf32> to vector<2x7xf32>
    %7 = arith.subf %5, %6 : vector<2x7xf32>
    %8 = vector.extract_strided_slice %1 {offsets = [0, 1], sizes = [2, 7], strides = [1, 1]} : vector<2x8xf32> to vector<2x7xf32>
    %9 = vector.extract_strided_slice %1 {offsets = [0, 0], sizes = [2, 7], strides = [1, 1]} : vector<2x8xf32> to vector<2x7xf32>
    %10 = arith.subf %8, %9 : vector<2x7xf32>
    %11 = vector.extract_strided_slice %4 {offsets = [0, 1], sizes = [2, 7], strides = [1, 1]} : vector<2x8xi1> to vector<2x7xi1>
    %cst = arith.constant dense<true> : vector<2x7xi1>
    %12 = arith.xori %11, %cst : vector<2x7xi1>
    %13 = vector.extract_strided_slice %4 {offsets = [0, 0], sizes = [2, 7], strides = [1, 1]} : vector<2x8xi1> to vector<2x7xi1>
    %cst_5 = arith.constant dense<true> : vector<2x7xi1>
    %14 = arith.xori %13, %cst_5 : vector<2x7xi1>
    %15 = arith.andi %12, %14 : vector<2x7xi1>
    %16 = arith.subf %7, %10 : vector<2x7xf32>
    %17 = math.absf %16 : vector<2x7xf32>
    %cst_6 = arith.constant 0.000000e+00 : f32
    %18 = vector.broadcast %cst_6 : f32 to vector<2x7xf32>
    %19 = arith.select %15, %17, %18 : vector<2x7xi1>, vector<2x7xf32>
    %20 = vector.shape_cast %19 : vector<2x7xf32> to vector<1x2x7xf32>
    %cst_7 = arith.constant dense<0.000000e+00> : vector<1xf32>
    %21 = vector.multi_reduction <add>, %20, %cst_7 [1, 2] : vector<1x2x7xf32> to vector<1xf32>
    %22 = vector.shape_cast %21 : vector<1xf32> to vector<1x1x1xf32>
    %23 = vector.extract %22[0, 0, 0] : f32 from vector<1x1x1xf32>
    %24 = arith.extui %15 : vector<2x7xi1> to vector<2x7xi32>
    %25 = arith.sitofp %24 : vector<2x7xi32> to vector<2x7xf32>
    %26 = vector.shape_cast %25 : vector<2x7xf32> to vector<1x2x7xf32>
    %cst_8 = arith.constant dense<0.000000e+00> : vector<1xf32>
    %27 = vector.multi_reduction <add>, %26, %cst_8 [1, 2] : vector<1x2x7xf32> to vector<1xf32>
    %28 = vector.shape_cast %27 : vector<1xf32> to vector<1x1x1xf32>
    %29 = vector.extract %28[0, 0, 0] : f32 from vector<1x1x1xf32>
    %30 = vector.broadcast %23 : f32 to vector<8x128xf32>
    %c0_9 = arith.constant 0 : index
    %c0_10 = arith.constant 0 : index
    %c0_11 = arith.constant 0 : index
    %c0_12 = arith.constant 0 : index
    %31 = vector.load %arg4[%c0_9, %c0_10, %c0_11, %c0_12] : memref<1x2x8x128xf32, #tpu.memory_space<vmem>>, vector<1x1x8x128xf32>
    %32 = vector.shape_cast %31 : vector<1x1x8x128xf32> to vector<8x128xf32>
    %33 = vector.shape_cast %30 : vector<8x128xf32> to vector<1x1x8x128xf32>
    tpu.vector_store %arg4[%c0_9, %c0_10, %c0_11, %c0_12], %33 {strides = array<i32>} : memref<1x2x8x128xf32, #tpu.memory_space<vmem>>, vector<1x1x8x128xf32>,
    %34 = vector.broadcast %29 : f32 to vector<8x128xf32>
    %c0_13 = arith.constant 0 : index
    %c1 = arith.constant 1 : index
    %c0_14 = arith.constant 0 : index
    %c0_15 = arith.constant 0 : index
    %35 = vector.load %arg4[%c0_13, %c1, %c0_14, %c0_15] : memref<1x2x8x128xf32, #tpu.memory_space<vmem>>, vector<1x1x8x128xf32>
    %36 = vector.shape_cast %35 : vector<1x1x8x128xf32> to vector<8x128xf32>
    %37 = vector.shape_cast %34 : vector<8x128xf32> to vector<1x1x8x128xf32>
    tpu.vector_store %arg4[%c0_13, %c1, %c0_14, %c0_15], %37 {strides = array<i32>} : memref<1x2x8x128xf32, #tpu.memory_space<vmem>>, vector<1x1x8x128xf32>,
    return
  }
  func.func @transform_0(%arg0: i32) -> (i32, i32) {
    %c0_i32 = arith.constant 0 : i32
    %c0_i32_0 = arith.constant 0 : i32
    return %arg0, %c0_i32 : i32, i32
  }
  func.func @transform_1(%arg0: i32) -> (i32, i32) {
    %c0_i32 = arith.constant 0 : i32
    %c0_i32_0 = arith.constant 0 : i32
    return %arg0, %c0_i32 : i32, i32
  }
  func.func @transform_2(%arg0: i32) -> (i32, i32) {
    %c0_i32 = arith.constant 0 : i32
    %c0_i32_0 = arith.constant 0 : i32
    return %arg0, %c0_i32 : i32, i32
  }
  func.func @transform_3(%arg0: i32) -> (i32, i32, i32, i32) {
    %c0_i32 = arith.constant 0 : i32
    %c0_i32_0 = arith.constant 0 : i32
    %c0_i32_1 = arith.constant 0 : i32
    %c0_i32_2 = arith.constant 0 : i32
    return %arg0, %c0_i32, %c0_i32_0, %c0_i32_1 : i32, i32, i32, i32
  }
}

</mosaic_0001>

<llo_original>
// kernel: temporal_consistency_loss.2
$region0: #{temporal_consistency_loss.2}
  #allocation0 [shape = 'u32[]', space=smem, size = 0x4, offset = 0x4, fixed_abs, tag = 'smem constant byte address 0x4 - core index']
  #allocation1 [shape = 'u32[144,128]{1,0:T(1,128)}', space=vmem, size = 0x12000, scoped, tag = 'internal scratch']
  %s0 = inlined_call_operand.vmem [shape: f32[2,8], index: 0, kind: input, shape index: {}]
  %s1 = inlined_call_operand.vmem [shape: f32[2,8], index: 1, kind: input, shape index: {}]
  %s2 = inlined_call_operand.vmem [shape: pred[2,8], index: 2, kind: input, shape index: {}]
  %s3 = inlined_call_operand.vmem [shape: f32[1,2,8,128], index: 3, kind: output, shape index: {}]
  %s4 = sld [smem:[#allocation0]]
  $region22: #{temporal_consistency_loss.2} parent=0
    _
  %s6 = ssub.s32 1, %s4
  %s7 = scalar_select 0, %s6, %s4
  $region1: #{temporal_consistency_loss.2} parent=0
    #allocation2 [shape = 'u8[512]{0}', space=vmem, size = 0x400, dematerialized = true, scoped, tag = 'FusionAdapter Buffer %fusion.1 = s8[2,8]{1,0:T(4,128)(4,1)} fusion(%param_2.1), kind=kLoop, calls=%fused_computation.1.clone, metadata={op_name="jit(temporal_consistency_loss)/convert_element_type" stack_frame_id=9}']
    // Predicated region
    $region2: #{temporal_consistency_loss.2} parent=1 // pred_check
      _
    $region3: #{temporal_consistency_loss.2} parent=1 // pred_check_branch
      %9 = sbr.rel (0) target = $region5
    $region4: #{temporal_consistency_loss.2} parent=1 // pred_region
      _
    $region5: #{temporal_consistency_loss.2} parent=1 // pred_fallthru
      _
    // Predicated region
    $region6: #{temporal_consistency_loss.2} parent=1 // pred_check
      _
    $region7: #{temporal_consistency_loss.2} parent=1 // pred_check_branch
      %11 = sbr.rel (0) target = $region9
    $region8: #{temporal_consistency_loss.2} parent=1 // pred_region
      _
    $region9: #{temporal_consistency_loss.2} parent=1 // pred_fallthru
      _
    // Predicated region
    $region10: #{temporal_consistency_loss.2} parent=1 // pred_check
      _
    $region11: #{temporal_consistency_loss.2} parent=1 // pred_check_branch
      %13 = sbr.rel (0) target = $region13
    $region12: #{temporal_consistency_loss.2} parent=1 // pred_region
      _
    $region13: #{temporal_consistency_loss.2} parent=1 // pred_fallthru
      _
    %s15 = sor.u32 15, 7
    %s16 = sand.u32 %s15, 1
    %v17 = vld [vmem:[%s2] ss:$0 sm:%s16]
    %v18 = vunpack.c.0.s8 %v17
    %v19 = vunpack.c.1.s8 %v17
    %v20 = vunpack.c.2.s8 %v17
    %v21 = vunpack.c.3.s8 %v17
    %22 = xla_tuple %v18
    %23 = xla_tuple %22
    %24 = xla_tuple %v18
    %v26 = vpack.c.b16 0, %v18
    %v27 = vpack.c.b8 0, %v26
    %28 = vst [vmem:[#allocation2] sm:$0x1] %v27
    %v31 = vld [vmem:[%s0] sm:$0x3]
    %v32 = vld [vmem:[%s1] sm:$0x3]
    %v33 = vld [vmem:[#allocation2] sm:$0x1]
    %vm34 = vnez %v33
    %36 = vrot.lane.b32.xlu0 %v31, 1
    %v37 = vpop.permute.xlu0 %36
    %v39 = vsub.f32 %v31, %v37
    %41 = vrot.lane.b32.xlu0 %v32, 1
    %v42 = vpop.permute.xlu0 %41
    %v44 = vsub.f32 %v32, %v42
    %v45 = vsel 1, 1, 0
    %v46 = vpack.c.b16 %v45, %v45
    %v47 = vpack.c.b8 %v46, %v46
    %vm48 = vnez %v47
    %vm49 = vmxor %vm34, %vm48
    %v50 = vsel %vm49, 16843009, 0
    %51 = vrot.lane.b32.xlu0 %v50, 1
    %v52 = vpop.permute.xlu0 %51
    %vm53 = vnez %v52
    %vm54 = vmand %vm49, %vm53
    %v55 = vsub.f32 %v39, %v44
    %v56 = vand.u32 2147483647, %v55
    %v57 = vsel %vm54, 16843009, 0
    %v58 = vunpack.c.0.s8 %v57
    %vm59 = vcmp.ne.s32.totalorder %v58, 0
    %v60 = vsel %vm59, %v56, 0.0
    %62 = vrot.lane.b32.xlu0 %v60, 127
    %v63 = vpop.permute.xlu0 %62
    %vm65 = vcmask 50176
    %v66 = vsel %vm65, %v63, 0.0
    %67 = vadd.xlane.f32.xlu0 %v66
    %v68 = vpop.xlane.xlu0 %67
    %v69 = vrot.slane %v68, 4
    %v70 = vadd.f32 %v68, %v69
    %v71 = vrot.slane %v70, 2
    %v72 = vadd.f32 %v70, %v71
    %v73 = vrot.slane %v72, 1
    %v74 = vadd.f32 %v72, %v73
    %s75 = vtos %v74
    %v76 = vsel %vm59, 1, 0
    %77 = vrot.lane.b32.xlu0 %v76, 127
    %v78 = vpop.permute.xlu0 %77
    %vm79 = vcmp.ne.s32.totalorder %v78, 0
    %v80 = vsel %vm79, 1, 0
    %v81 = vcvt.s32.f32 %v80
    %v82 = vsel %vm65, %v81, 0.0
    %83 = vadd.xlane.f32.xlu0 %v82
    %v84 = vpop.xlane.xlu0 %83
    %v85 = vrot.slane %v84, 4
    %v86 = vadd.f32 %v84, %v85
    %v87 = vrot.slane %v86, 2
    %v88 = vadd.f32 %v86, %v87
    %v89 = vrot.slane %v88, 1
    %v90 = vadd.f32 %v88, %v89
    %s91 = vtos %v90
    %v92 = vstv %s75
    %93 = vst [vmem:[%s3] sm:$0xff] %v92
    %v94 = vstv %s91
    %s95 = scalar_lea.vmem %s3, 8
    %96 = vst [vmem:[%s95] sm:$0xff] %v94
    // Predicated region
    $region14: #{temporal_consistency_loss.2} parent=1 // pred_check
      _
    $region15: #{temporal_consistency_loss.2} parent=1 // pred_check_branch
      %98 = sbr.rel (0) target = $region17
    $region16: #{temporal_consistency_loss.2} parent=1 // pred_region
      _
    $region17: #{temporal_consistency_loss.2} parent=1 // pred_fallthru
      _
    // Predicated region
    $region18: #{temporal_consistency_loss.2} parent=1 // pred_check
      _
    $region19: #{temporal_consistency_loss.2} parent=1 // pred_check_branch
      %100 = sbr.rel (0) target = $region21
    $region20: #{temporal_consistency_loss.2} parent=1 // pred_region
      _
    $region21: #{temporal_consistency_loss.2} parent=1 // pred_fallthru
      _

</llo_original>
